<compile_context>
chip_gen: v7x
topology: tpu7x:2x2x1
jax: 0.10.0
libtpu: 0.0.40
codegen_flags: <defaults>
</compile_context>

<pallas_src>
import functools

import jax
import jax.numpy as jnp
from jax.experimental import pallas as pl
from jax.experimental.pallas import tpu as pltpu


_LANE = 128          # last-dim (lane) alignment target
_SUBLANE_BF16 = 16   # batch-tile granularity for bf16 operands


def _round_up(x: int, m: int) -> int:
    return (x + m - 1) // m * m


def _mlp_encoder_kernel(x_ref, w1_ref, b1_ref, w2_ref, b2_ref, o_ref):
    # Layer 1: Linear + ReLU   (bf16 x bf16 -> f32 accumulate on the MXU)
    x = x_ref[...]                                            # (tb, Dp) bf16
    h = jnp.dot(x, w1_ref[...], preferred_element_type=jnp.float32)
    h = jnp.maximum(h + b1_ref[...], 0.0)                     # (tb, Hp) f32
    # Layer 2: Linear
    y = jnp.dot(h.astype(w2_ref.dtype), w2_ref[...],
                preferred_element_type=jnp.float32)           # (tb, Op) f32
    o_ref[...] = (y + b2_ref[...]).astype(o_ref.dtype)


@functools.partial(jax.jit, static_argnames=("tile_b",))
def mlp_encoder(x, w1, b1, w2, b2, *, tile_b=256):
    """forward(X) = relu(X @ w1 + b1) @ w2 + b2.

    x: (B, D); w1: (D, H); b1: (H,)|(1,H); w2: (H, O); b2: (O,)|(1,O).
    """
    B, D = x.shape
    d_in, H = w1.shape
    h_in, O = w2.shape
    assert D == d_in and H == h_in, "weight shapes inconsistent with input"
    out_dtype = x.dtype

    # ---- Pad to TPU-friendly shapes (zero padding is a mathematical no-op:
    # padded input cols / hidden units contribute 0, padded rows/cols of the
    # output are sliced off). --------------------------------------------------
    Dp = _round_up(D, _LANE)
    Hp = _round_up(H, _LANE)
    Op = _round_up(O, _LANE)
    tb = _round_up(min(tile_b, _round_up(B, _SUBLANE_BF16)), _SUBLANE_BF16)
    Bp = _round_up(B, tb)
    n_tiles = Bp // tb

    cdtype = jnp.bfloat16  # matmul operand dtype; accumulation stays f32
    xp = jnp.zeros((Bp, Dp), cdtype).at[:B, :D].set(x.astype(cdtype))
    w1p = jnp.zeros((Dp, Hp), cdtype).at[:D, :H].set(w1.astype(cdtype))
    w2p = jnp.zeros((Hp, Op), cdtype).at[:H, :O].set(w2.astype(cdtype))
    b1p = jnp.zeros((1, Hp), jnp.float32).at[:, :H].set(
        b1.reshape(1, H).astype(jnp.float32))
    b2p = jnp.zeros((1, Op), jnp.float32).at[:, :O].set(
        b2.reshape(1, O).astype(jnp.float32))

    # ---- VMEM budget / scheduler hints ---------------------------------------
    out_bytes = jnp.dtype(out_dtype).itemsize
    vmem_est = (
        2 * tb * Dp * 2                    # X tiles (double-buffered, bf16)
        + 2 * tb * Op * out_bytes          # output tiles (double-buffered)
        + 2 * (Dp * Hp + Hp * Op) * 2      # resident weights (2 bufs each, bf16)
        + 2 * (Hp + Op) * 4                # biases (f32)
        + tb * (Hp + Op) * 4               # f32 intermediates
    ) + (4 << 20)                          # headroom for compiler temps/spills
    vmem_limit = int(min(max(vmem_est, 32 << 20), 128 << 20))

    cost = pl.CostEstimate(
        flops=2 * Bp * Dp * Hp + 2 * Bp * Hp * Op,
        transcendentals=0,
        bytes_accessed=(xp.size * 2 + w1p.size * 2 + w2p.size * 2
                        + b1p.size * 4 + b2p.size * 4 + Bp * Op * out_bytes),
    )

    out_padded = pl.pallas_call(
        _mlp_encoder_kernel,
        out_shape=jax.ShapeDtypeStruct((Bp, Op), out_dtype),
        grid_spec=pltpu.PrefetchScalarGridSpec(
            num_scalar_prefetch=0,
            grid=(n_tiles,),
            in_specs=[
                pl.BlockSpec((tb, Dp), lambda i: (i, 0)),   # X tile
                pl.BlockSpec((Dp, Hp), lambda i: (0, 0)),   # W1 (resident)
                pl.BlockSpec((1, Hp), lambda i: (0, 0)),    # b1
                pl.BlockSpec((Hp, Op), lambda i: (0, 0)),   # W2 (resident)
                pl.BlockSpec((1, Op), lambda i: (0, 0)),    # b2
            ],
            out_specs=pl.BlockSpec((tb, Op), lambda i: (i, 0)),
        ),
        compiler_params=pltpu.CompilerParams(
            dimension_semantics=("parallel",),
            vmem_limit_bytes=vmem_limit,
        ),
        cost_estimate=cost,
    )(xp, w1p, b1p, w2p, b2p)

    return out_padded[:B, :O]


def _xavier_uniform(key, shape, dtype=jnp.float32):
    # shape = (fan_in, fan_out) since weights are stored pre-transposed.
    fan_in, fan_out = shape
    limit = jnp.sqrt(6.0 / (fan_in + fan_out))
    return jax.random.uniform(key, shape, dtype, minval=-limit, maxval=limit)


def reference_forward(x, w1, b1, w2, b2):
    h = jnp.maximum(x @ w1 + b1.reshape(1, -1), 0.0)
    return h @ w2 + b2.reshape(1, -1)


if __name__ == "__main__":
    key = jax.random.PRNGKey(0)
    kx, kw1, kb1, kw2, kb2 = jax.random.split(key, 5)

    # MLPEncoder with architecture=[200, 96], output_dim=150.  Ragged batch
    # (500) and unaligned feature dims exercise the padding path; after tiling
    # with tile_b=256 the grid has 2 "parallel" steps (both TCs busy on v7x).
    B, D, H, O = 500, 200, 96, 150

    x = jax.random.normal(kx, (B, D), jnp.float32)
    w1 = _xavier_uniform(kw1, (D, H))                       # encoder-layer weight
    b1 = 0.1 * jax.random.normal(kb1, (H,), jnp.float32)    # encoder-layer bias
    w2 = _xavier_uniform(kw2, (H, O))                       # output-layer weight
    b2 = 0.1 * jax.random.normal(kb2, (O,), jnp.float32)    # output-layer bias

    out = mlp_encoder(x, w1, b1, w2, b2, tile_b=256)
    out = jax.block_until_ready(out)

    ref = reference_forward(x, w1, b1, w2, b2)
    assert out.shape == (B, O), out.shape
    # bf16 matmul operands with f32 accumulation -> loosened tolerance.
    max_err = float(jnp.max(jnp.abs(out - ref)))
    assert jnp.allclose(out, ref, atol=5e-2, rtol=5e-2), (
        f"mismatch vs reference (max abs err={max_err:.4f})")

    print("KERNEL_OK")
</pallas_src>

<mosaic_0001>
module attributes {stable_mosaic.version = 11 : i64} {
  func.func @_mlp_encoder_kernel(%arg0: i32, %arg1: memref<256x256xbf16, #tpu.memory_space<vmem>>, %arg2: memref<256x128xbf16, #tpu.memory_space<vmem>>, %arg3: memref<1x128xf32, #tpu.memory_space<vmem>>, %arg4: memref<128x256xbf16, #tpu.memory_space<vmem>>, %arg5: memref<1x256xf32, #tpu.memory_space<vmem>>, %arg6: memref<256x256xf32, #tpu.memory_space<vmem>>) attributes {dimension_semantics = [#tpu.dimension_semantics<parallel>], iteration_bounds = array<i64: 2>, scalar_prefetch = 0 : i64, scratch_operands = 0 : i64, tpu.core_type = #tpu.core_type<tc>, window_params = [{transform_indices = @transform_0, window_bounds = array<i64: 256, 256>}, {pipeline_mode = #tpu.pipeline_mode<synchronous>, transform_indices = @transform_1, window_bounds = array<i64: 256, 128>}, {pipeline_mode = #tpu.pipeline_mode<synchronous>, transform_indices = @transform_2, window_bounds = array<i64: 1, 128>}, {pipeline_mode = #tpu.pipeline_mode<synchronous>, transform_indices = @transform_3, window_bounds = array<i64: 128, 256>}, {pipeline_mode = #tpu.pipeline_mode<synchronous>, transform_indices = @transform_4, window_bounds = array<i64: 1, 256>}, {transform_indices = @transform_5, window_bounds = array<i64: 256, 256>}]} {
    %c0 = arith.constant 0 : index
    %c0_0 = arith.constant 0 : index
    %0 = vector.load %arg1[%c0, %c0_0] : memref<256x256xbf16, #tpu.memory_space<vmem>>, vector<256x256xbf16>
    %c0_1 = arith.constant 0 : index
    %c0_2 = arith.constant 0 : index
    %1 = vector.load %arg2[%c0_1, %c0_2] : memref<256x128xbf16, #tpu.memory_space<vmem>>, vector<256x128xbf16>
    %cst = arith.constant dense<0.000000e+00> : vector<256x128xf32>
    %2 = tpu.matmul %0, %1, %cst {dimension_numbers = #tpu.dot_dimension_numbers<[1], [0], [0], [1], [0, 0, 1, 1], [], []>} : vector<256x256xbf16>, vector<256x128xbf16>, vector<256x128xf32> -> vector<256x128xf32>
    %c0_3 = arith.constant 0 : index
    %c0_4 = arith.constant 0 : index
    %3 = vector.load %arg3[%c0_3, %c0_4] : memref<1x128xf32, #tpu.memory_space<vmem>>, vector<1x128xf32>
    %4 = vector.broadcast %3 : vector<1x128xf32> to vector<256x128xf32>
    %5 = arith.addf %2, %4 : vector<256x128xf32>
    %cst_5 = arith.constant 0.000000e+00 : f32
    %6 = vector.broadcast %cst_5 : f32 to vector<256x128xf32>
    %7 = arith.maximumf %5, %6 : vector<256x128xf32>
    %8 = arith.truncf %7 : vector<256x128xf32> to vector<256x128xbf16>
    %c0_6 = arith.constant 0 : index
    %c0_7 = arith.constant 0 : index
    %9 = vector.load %arg4[%c0_6, %c0_7] : memref<128x256xbf16, #tpu.memory_space<vmem>>, vector<128x256xbf16>
    %cst_8 = arith.constant dense<0.000000e+00> : vector<256x256xf32>
    %10 = tpu.matmul %8, %9, %cst_8 {dimension_numbers = #tpu.dot_dimension_numbers<[1], [0], [0], [1], [0, 0, 1, 1], [], []>} : vector<256x128xbf16>, vector<128x256xbf16>, vector<256x256xf32> -> vector<256x256xf32>
    %c0_9 = arith.constant 0 : index
    %c0_10 = arith.constant 0 : index
    %11 = vector.load %arg5[%c0_9, %c0_10] : memref<1x256xf32, #tpu.memory_space<vmem>>, vector<1x256xf32>
    %12 = vector.broadcast %11 : vector<1x256xf32> to vector<256x256xf32>
    %13 = arith.addf %10, %12 : vector<256x256xf32>
    %c0_11 = arith.constant 0 : index
    %c0_12 = arith.constant 0 : index
    %14 = vector.load %arg6[%c0_11, %c0_12] : memref<256x256xf32, #tpu.memory_space<vmem>>, vector<256x256xf32>
    tpu.vector_store %arg6[%c0_11, %c0_12], %13 {strides = array<i32>} : memref<256x256xf32, #tpu.memory_space<vmem>>, vector<256x256xf32>,
    return
  }
  func.func @transform_0(%arg0: i32) -> (i32, i32) {
    %c0_i32 = arith.constant 0 : i32
    %c0_i32_0 = arith.constant 0 : i32
    return %arg0, %c0_i32 : i32, i32
  }
  func.func @transform_1(%arg0: i32) -> (i32, i32) {
    %c0_i32 = arith.constant 0 : i32
    %c0_i32_0 = arith.constant 0 : i32
    %c0_i32_1 = arith.constant 0 : i32
    return %c0_i32, %c0_i32_0 : i32, i32
  }
  func.func @transform_2(%arg0: i32) -> (i32, i32) {
    %c0_i32 = arith.constant 0 : i32
    %c0_i32_0 = arith.constant 0 : i32
    %c0_i32_1 = arith.constant 0 : i32
    return %c0_i32, %c0_i32_0 : i32, i32
  }
  func.func @transform_3(%arg0: i32) -> (i32, i32) {
    %c0_i32 = arith.constant 0 : i32
    %c0_i32_0 = arith.constant 0 : i32
    %c0_i32_1 = arith.constant 0 : i32
    return %c0_i32, %c0_i32_0 : i32, i32
  }
  func.func @transform_4(%arg0: i32) -> (i32, i32) {
    %c0_i32 = arith.constant 0 : i32
    %c0_i32_0 = arith.constant 0 : i32
    %c0_i32_1 = arith.constant 0 : i32
    return %c0_i32, %c0_i32_0 : i32, i32
  }
  func.func @transform_5(%arg0: i32) -> (i32, i32) {
    %c0_i32 = arith.constant 0 : i32
    %c0_i32_0 = arith.constant 0 : i32
    return %arg0, %c0_i32 : i32, i32
  }
}

</mosaic_0001>

<llo_original>
// kernel: mlp_encoder.1
$region0: #{mlp_encoder.1}
  #allocation0 [shape = 'u32[]', space=smem, size = 0x4, offset = 0x4, fixed_abs, tag = 'smem constant byte address 0x4 - core index']
  #allocation1 [shape = 'u32[144,128]{1,0:T(1,128)}', space=vmem, size = 0x12000, scoped, tag = 'internal scratch']
  %s0 = inlined_call_operand.vmem [shape: bf16[512,256], index: 0, kind: input, shape index: {}]
  %s1 = inlined_call_operand.vmem [shape: bf16[256,128], index: 1, kind: input, shape index: {}]
  %s2 = inlined_call_operand.vmem [shape: f32[1,128], index: 2, kind: input, shape index: {}]
  %s3 = inlined_call_operand.vmem [shape: bf16[128,256], index: 3, kind: input, shape index: {}]
  %s4 = inlined_call_operand.vmem [shape: f32[1,256], index: 4, kind: input, shape index: {}]
  %s5 = inlined_call_operand.vmem [shape: f32[512,256], index: 5, kind: output, shape index: {}]
  %s6 = sld [smem:[#allocation0]]
  $region53: #{mlp_encoder.1} parent=0
    _
  %s8 = ssub.s32 1, %s6
  %s9 = scalar_select 0, %s8, %s6
  loop: start=0, step=1, limit=4
  $region2: #{mlp_encoder.1} parent=0 // loop_pre_header
    _
  $region3: #{mlp_encoder.1} parent=0 // loop_header
    %s11 = sphi 0, %s15
    %p12 = scmp.ge.s32.totalorder %s11, 4
    %s21 = sphi 0, %s23
    %s24 = sphi 0, %s21
    %s25 = sphi 0, %s24
    %s41 = sphi 0, %s25
    %s45 = sphi 0, %s45
    %s47 = sphi 0, %s45
    %s48 = sphi 0, %s47
    %s62 = sphi 0, %s48
    %s66 = sphi 0, %s66
    %s68 = sphi 0, %s66
    %s69 = sphi 0, %s68
    %s83 = sphi 0, %s69
    %s87 = sphi 0, %s87
    %s89 = sphi 0, %s87
    %s90 = sphi 0, %s89
    %s104 = sphi 0, %s90
    %s108 = sphi 0, %s108
    %s110 = sphi 0, %s108
    %s111 = sphi 0, %s110
    %s125 = sphi 0, %s111
    %s131 = sphi 0, %s133
    %s134 = sphi 0, %s131
    %s135 = sphi 0, %s134
    %s151 = sphi 0, %s135
  $region4: #{mlp_encoder.1} parent=0 // loop_header_branch
    %14 = sbr.rel (%p12) target = $region8
  $region5: #{mlp_encoder.1} parent=0 // loop_body
    %s16 = ssub.s32 %s11, 1
    %s17 = ssub.s32 %s11, 2
    %s18 = sadd.s32 %s11, 1
    %s19 = ssub.s32 %s11, %s18
    %p20 = scmp.eq.s32.totalorder %s19, 0
    %s22 = sadd.s32 %s21, 1
    %s23 = scalar_select %p20, %s21, %s22
    %p26 = pneg %p20
    %p27 = scmp.eq.s32.totalorder %s11, 1
    %p28 = por %p26, %p27
    %p29 = scmp.ne.s32.totalorder %s21, %s24
    %p30 = scmp.eq.s32.totalorder %s11, 0
    %p31 = por %p29, %p30
    %p32 = scmp.ne.s32.totalorder %s21, %s24
    %p33 = scmp.eq.s32.totalorder %s16, 1
    %p34 = por %p32, %p33
    %p35 = scmp.ne.s32.totalorder %s24, %s25
    %p36 = scmp.eq.s32.totalorder %s16, 0
    %p37 = por %p35, %p36
    %p38 = scmp.ne.s32.totalorder %s24, %s25
    %p39 = scmp.eq.s32.totalorder %s17, 1
    %p40 = por %p38, %p39
    %p42 = scmp.ne.s32.totalorder %s25, %s41
    %p43 = scmp.eq.s32.totalorder %s17, 0
    %p44 = por %p42, %p43
    %s46 = sadd.s32 %s45, 1
    %p49 = scmp.eq.s32.totalorder %s11, 1
    %p50 = scmp.ne.s32.totalorder %s45, %s47
    %p51 = scmp.eq.s32.totalorder %s11, 0
    %p52 = por %p50, %p51
    %p53 = scmp.ne.s32.totalorder %s45, %s47
    %p54 = scmp.eq.s32.totalorder %s16, 1
    %p55 = por %p53, %p54
    %p56 = scmp.ne.s32.totalorder %s47, %s48
    %p57 = scmp.eq.s32.totalorder %s16, 0
    %p58 = por %p56, %p57
    %p59 = scmp.ne.s32.totalorder %s47, %s48
    %p60 = scmp.eq.s32.totalorder %s17, 1
    %p61 = por %p59, %p60
    %p63 = scmp.ne.s32.totalorder %s48, %s62
    %p64 = scmp.eq.s32.totalorder %s17, 0
    %p65 = por %p63, %p64
    %s67 = sadd.s32 %s66, 1
    %p70 = scmp.eq.s32.totalorder %s11, 1
    %p71 = scmp.ne.s32.totalorder %s66, %s68
    %p72 = scmp.eq.s32.totalorder %s11, 0
    %p73 = por %p71, %p72
    %p74 = scmp.ne.s32.totalorder %s66, %s68
    %p75 = scmp.eq.s32.totalorder %s16, 1
    %p76 = por %p74, %p75
    %p77 = scmp.ne.s32.totalorder %s68, %s69
    %p78 = scmp.eq.s32.totalorder %s16, 0
    %p79 = por %p77, %p78
    %p80 = scmp.ne.s32.totalorder %s68, %s69
    %p81 = scmp.eq.s32.totalorder %s17, 1
    %p82 = por %p80, %p81
    %p84 = scmp.ne.s32.totalorder %s69, %s83
    %p85 = scmp.eq.s32.totalorder %s17, 0
    %p86 = por %p84, %p85
    %s88 = sadd.s32 %s87, 1
    %p91 = scmp.eq.s32.totalorder %s11, 1
    %p92 = scmp.ne.s32.totalorder %s87, %s89
    %p93 = scmp.eq.s32.totalorder %s11, 0
    %p94 = por %p92, %p93
    %p95 = scmp.ne.s32.totalorder %s87, %s89
    %p96 = scmp.eq.s32.totalorder %s16, 1
    %p97 = por %p95, %p96
    %p98 = scmp.ne.s32.totalorder %s89, %s90
    %p99 = scmp.eq.s32.totalorder %s16, 0
    %p100 = por %p98, %p99
    %p101 = scmp.ne.s32.totalorder %s89, %s90
    %p102 = scmp.eq.s32.totalorder %s17, 1
    %p103 = por %p101, %p102
    %p105 = scmp.ne.s32.totalorder %s90, %s104
    %p106 = scmp.eq.s32.totalorder %s17, 0
    %p107 = por %p105, %p106
    %s109 = sadd.s32 %s108, 1
    %p112 = scmp.eq.s32.totalorder %s11, 1
    %p113 = scmp.ne.s32.totalorder %s108, %s110
    %p114 = scmp.eq.s32.totalorder %s11, 0
    %p115 = por %p113, %p114
    %p116 = scmp.ne.s32.totalorder %s108, %s110
    %p117 = scmp.eq.s32.totalorder %s16, 1
    %p118 = por %p116, %p117
    %p119 = scmp.ne.s32.totalorder %s110, %s111
    %p120 = scmp.eq.s32.totalorder %s16, 0
    %p121 = por %p119, %p120
    %p122 = scmp.ne.s32.totalorder %s110, %s111
    %p123 = scmp.eq.s32.totalorder %s17, 1
    %p124 = por %p122, %p123
    %p126 = scmp.ne.s32.totalorder %s111, %s125
    %p127 = scmp.eq.s32.totalorder %s17, 0
    %p128 = por %p126, %p127
    %s129 = ssub.s32 %s11, %s18
    %p130 = scmp.eq.s32.totalorder %s129, 0
    %s132 = sadd.s32 %s131, 1
    %s133 = scalar_select %p130, %s131, %s132
    %p136 = pneg %p130
    %p137 = scmp.eq.s32.totalorder %s11, 1
    %p138 = por %p136, %p137
    %p139 = scmp.ne.s32.totalorder %s131, %s134
    %p140 = scmp.eq.s32.totalorder %s11, 0
    %p141 = por %p139, %p140
    %p142 = scmp.ne.s32.totalorder %s131, %s134
    %p143 = scmp.eq.s32.totalorder %s16, 1
    %p144 = por %p142, %p143
    %p145 = scmp.ne.s32.totalorder %s134, %s135
    %p146 = scmp.eq.s32.totalorder %s16, 0
    %p147 = por %p145, %p146
    %p148 = scmp.ne.s32.totalorder %s134, %s135
    %p149 = scmp.eq.s32.totalorder %s17, 1
    %p150 = por %p148, %p149
    %p152 = scmp.ne.s32.totalorder %s135, %s151
    %p153 = scmp.eq.s32.totalorder %s17, 0
    %p154 = por %p152, %p153
    %p155 = scmp.le.s32.totalorder 1, %s11
    %p156 = scmp.lt.s32.totalorder %s11, 3
    %p157 = pnand %p155, %p156
    %p158 = pneg %p157
    // Predicated region
    $region9: #{mlp_encoder.1} parent=5 // pred_check
      _
    $region10: #{mlp_encoder.1} parent=5 // pred_check_branch
      %160 = sbr.rel (%p157) target = $region12
    $region11: #{mlp_encoder.1} parent=5 // pred_region
      %s161 = ssub.s32 %s11, 1
      // Predicated region
      $region13: #{mlp_encoder.1} parent=11 // pred_check
        %p162 = pneg %p58
      $region14: #{mlp_encoder.1} parent=11 // pred_check_branch
        %164 = sbr.rel (%p162) target = $region16
      $region15: #{mlp_encoder.1} parent=11 // pred_region
        _
      $region16: #{mlp_encoder.1} parent=11 // pred_fallthru
        _
      // Predicated region
      $region17: #{mlp_encoder.1} parent=11 // pred_check
        %p165 = pneg %p79
      $region18: #{mlp_encoder.1} parent=11 // pred_check_branch
        %167 = sbr.rel (%p165) target = $region20
      $region19: #{mlp_encoder.1} parent=11 // pred_region
        _
      $region20: #{mlp_encoder.1} parent=11 // pred_fallthru
        _
      // Predicated region
      $region21: #{mlp_encoder.1} parent=11 // pred_check
        %p168 = pneg %p100
      $region22: #{mlp_encoder.1} parent=11 // pred_check_branch
        %170 = sbr.rel (%p168) target = $region24
      $region23: #{mlp_encoder.1} parent=11 // pred_region
        _
      $region24: #{mlp_encoder.1} parent=11 // pred_fallthru
        _
      // Predicated region
      $region25: #{mlp_encoder.1} parent=11 // pred_check
        %p171 = pneg %p121
      $region26: #{mlp_encoder.1} parent=11 // pred_check_branch
        %173 = sbr.rel (%p171) target = $region28
      $region27: #{mlp_encoder.1} parent=11 // pred_region
        _
      $region28: #{mlp_encoder.1} parent=11 // pred_fallthru
        _
    $region12: #{mlp_encoder.1} parent=5 // pred_fallthru
      _
    %p174 = scmp.lt.s32.totalorder %s11, 2
    // Predicated region
    $region29: #{mlp_encoder.1} parent=5 // pred_check
      %p175 = pneg %p174
    $region30: #{mlp_encoder.1} parent=5 // pred_check_branch
      %177 = sbr.rel (%p175) target = $region32
    $region31: #{mlp_encoder.1} parent=5 // pred_region
      // Predicated region
      $region33: #{mlp_encoder.1} parent=31 // pred_check
        %p178 = pneg %p31
      $region34: #{mlp_encoder.1} parent=31 // pred_check_branch
        %180 = sbr.rel (%p178) target = $region36
      $region35: #{mlp_encoder.1} parent=31 // pred_region
        %s181 = smul.u32 32, %s11
        %p182 = scmp.lt.s32.totalorder %s181, 63
        %s183 = scalar_select %p182, %s181, 63
        %s184 = smul.addr %s183, 2
        %s185 = smul.addr %s184, 4
        %s186 = scalar_lea.vmem %s0, %s185
        %s187 = smul.u32 32, %s11
      $region36: #{mlp_encoder.1} parent=31 // pred_fallthru
        _
    $region32: #{mlp_encoder.1} parent=5 // pred_fallthru
      _
    %p188 = scmp.le.s32.totalorder 1, %s11
    %p189 = scmp.lt.s32.totalorder %s11, 3
    %p190 = pnand %p188, %p189
    %p191 = pneg %p190
    // Predicated region
    $region37: #{mlp_encoder.1} parent=5 // pred_check
      _
    $region38: #{mlp_encoder.1} parent=5 // pred_check_branch
      %193 = sbr.rel (%p190) target = $region40
    $region39: #{mlp_encoder.1} parent=5 // pred_region
      %s194 = ssub.s32 %s11, 1
      %s195 = smul.u32 32, %s16
      %p196 = scmp.lt.s32.totalorder %s195, 63
      %s197 = scalar_select %p196, %s195, 63
      %s198 = smul.addr %s197, 2
      %s199 = smul.addr %s198, 4
      %s200 = scalar_lea.vmem %s0, %s199
      %p201 = pneg %p37
      %p202 = pneg %p34
      %p203 = pneg %p58
      %p204 = pneg %p55
      %p205 = pneg %p79
      %p206 = pneg %p76
      %p207 = pneg %p100
      %p208 = pneg %p97
      %p209 = pneg %p121
      %p210 = pneg %p118
      %p211 = pneg %p147
      %p212 = pneg %p144
      %s213 = smul.u32 32, %s16
      %p214 = scmp.lt.s32.totalorder %s213, 63
      %s215 = scalar_select %p214, %s213, 63
      %s216 = smul.addr %s215, 2
      %s217 = smul.addr %s216, 8
      %s218 = scalar_lea.vmem %s5, %s217
      %s219 = smul.u32 32, %s16
      %p220 = scmp.lt.s32.totalorder %s219, 63
      %s221 = scalar_select %p220, %s219, 63
      %s222 = smul.addr %s221, 2
      %s223 = smul.addr %s222, 4
      %s224 = scalar_lea.vmem %s0, %s223
      %s225 = smul.u32 32, %s16
      %s226 = smul.u32 32, %s16
      %p227 = scmp.lt.s32.totalorder %s226, 63
      %s228 = scalar_select %p227, %s226, 63
      %s229 = smul.addr %s228, 2
      %s230 = smul.addr %s229, 8
      %s231 = scalar_lea.vmem %s5, %s230
      %s232 = smul.u32 32, %s16
      %v234 = vld [vmem:[%s224] sm:$0xff]
      %v235 = vld [vmem:[%s224 + $0x8] sm:$0xff]
      %v236 = vld [vmem:[%s224 + $0x10] sm:$0xff]
      %v237 = vld [vmem:[%s224 + $0x18] sm:$0xff]
      %v238 = vld [vmem:[%s224 + $0x20] sm:$0xff]
      %v239 = vld [vmem:[%s224 + $0x28] sm:$0xff]
      %v240 = vld [vmem:[%s224 + $0x30] sm:$0xff]
      %v241 = vld [vmem:[%s224 + $0x38] sm:$0xff]
      %v242 = vld [vmem:[%s224 + $0x40] sm:$0xff]
      %v243 = vld [vmem:[%s224 + $0x48] sm:$0xff]
      %v244 = vld [vmem:[%s224 + $0x50] sm:$0xff]
      %v245 = vld [vmem:[%s224 + $0x58] sm:$0xff]
      %v246 = vld [vmem:[%s224 + $0x60] sm:$0xff]
      %v247 = vld [vmem:[%s224 + $0x68] sm:$0xff]
      %v248 = vld [vmem:[%s224 + $0x70] sm:$0xff]
      %v249 = vld [vmem:[%s224 + $0x78] sm:$0xff]
      %v250 = vld [vmem:[%s224 + $0x80] sm:$0xff]
      %v251 = vld [vmem:[%s224 + $0x88] sm:$0xff]
      %v252 = vld [vmem:[%s224 + $0x90] sm:$0xff]
      %v253 = vld [vmem:[%s224 + $0x98] sm:$0xff]
      %v254 = vld [vmem:[%s224 + $0xa0] sm:$0xff]
      %v255 = vld [vmem:[%s224 + $0xa8] sm:$0xff]
      %v256 = vld [vmem:[%s224 + $0xb0] sm:$0xff]
      %v257 = vld [vmem:[%s224 + $0xb8] sm:$0xff]
      %v258 = vld [vmem:[%s224 + $0xc0] sm:$0xff]
      %v259 = vld [vmem:[%s224 + $0xc8] sm:$0xff]
      %v260 = vld [vmem:[%s224 + $0xd0] sm:$0xff]
      %v261 = vld [vmem:[%s224 + $0xd8] sm:$0xff]
      %v262 = vld [vmem:[%s224 + $0xe0] sm:$0xff]
      %v263 = vld [vmem:[%s224 + $0xe8] sm:$0xff]
      %v264 = vld [vmem:[%s224 + $0xf0] sm:$0xff]
      %v265 = vld [vmem:[%s224 + $0xf8] sm:$0xff]
      %v266 = vld [vmem:[%s1] sm:$0xf]
      %v267 = vld [vmem:[%s1 + $0x4] sm:$0xf]
      %v268 = vld [vmem:[%s1 + $0x8] sm:$0xf]
      %v269 = vld [vmem:[%s1 + $0xc] sm:$0xf]
      %v270 = vld [vmem:[%s1 + $0x10] sm:$0xf]
      %v271 = vld [vmem:[%s1 + $0x14] sm:$0xf]
      %v272 = vld [vmem:[%s1 + $0x18] sm:$0xf]
      %v273 = vld [vmem:[%s1 + $0x1c] sm:$0xf]
      %v274 = vld [vmem:[%s1 + $0x20] sm:$0xf]
      %v275 = vld [vmem:[%s1 + $0x24] sm:$0xf]
      %v276 = vld [vmem:[%s1 + $0x28] sm:$0xf]
      %v277 = vld [vmem:[%s1 + $0x2c] sm:$0xf]
      %v278 = vld [vmem:[%s1 + $0x30] sm:$0xf]
      %v279 = vld [vmem:[%s1 + $0x34] sm:$0xf]
      %v280 = vld [vmem:[%s1 + $0x38] sm:$0xf]
      %v281 = vld [vmem:[%s1 + $0x3c] sm:$0xf]
      %v282 = vld [vmem:[%s1 + $0x40] sm:$0xf]
      %v283 = vld [vmem:[%s1 + $0x44] sm:$0xf]
      %v284 = vld [vmem:[%s1 + $0x48] sm:$0xf]
      %v285 = vld [vmem:[%s1 + $0x4c] sm:$0xf]
      %v286 = vld [vmem:[%s1 + $0x50] sm:$0xf]
      %v287 = vld [vmem:[%s1 + $0x54] sm:$0xf]
      %v288 = vld [vmem:[%s1 + $0x58] sm:$0xf]
      %v289 = vld [vmem:[%s1 + $0x5c] sm:$0xf]
      %v290 = vld [vmem:[%s1 + $0x60] sm:$0xf]
      %v291 = vld [vmem:[%s1 + $0x64] sm:$0xf]
      %v292 = vld [vmem:[%s1 + $0x68] sm:$0xf]
      %v293 = vld [vmem:[%s1 + $0x6c] sm:$0xf]
      %v294 = vld [vmem:[%s1 + $0x70] sm:$0xf]
      %v295 = vld [vmem:[%s1 + $0x74] sm:$0xf]
      %v296 = vld [vmem:[%s1 + $0x78] sm:$0xf]
      %v297 = vld [vmem:[%s1 + $0x7c] sm:$0xf]
      %v298 = vld [vmem:[%s2] sm:$0x1]
      %v300 = vlaneseq
      %v301 = vshrl.u32 %v300, 7
      %v302 = vsub.s32 0, %v301
      %v303 = vrot.slane %v298, %v302
      %v337 = vunpack.c.l.b16 %v234
      %v338 = vunpack.c.h.b16 %v234
      %v339 = vunpack.c.l.b16 %v235
      %v340 = vunpack.c.h.b16 %v235
      %v341 = vunpack.c.l.b16 %v236
      %v342 = vunpack.c.h.b16 %v236
      %v343 = vunpack.c.l.b16 %v237
      %v344 = vunpack.c.h.b16 %v237
      %v345 = vunpack.c.l.b16 %v238
      %v346 = vunpack.c.h.b16 %v238
      %v347 = vunpack.c.l.b16 %v239
      %v348 = vunpack.c.h.b16 %v239
      %v349 = vunpack.c.l.b16 %v240
      %v350 = vunpack.c.h.b16 %v240
      %v351 = vunpack.c.l.b16 %v241
      %v352 = vunpack.c.h.b16 %v241
      %v353 = vunpack.c.l.b16 %v242
      %v354 = vunpack.c.h.b16 %v242
      %v355 = vunpack.c.l.b16 %v243
      %v356 = vunpack.c.h.b16 %v243
      %v357 = vunpack.c.l.b16 %v244
      %v358 = vunpack.c.h.b16 %v244
      %v359 = vunpack.c.l.b16 %v245
      %v360 = vunpack.c.h.b16 %v245
      %v361 = vunpack.c.l.b16 %v246
      %v362 = vunpack.c.h.b16 %v246
      %v363 = vunpack.c.l.b16 %v247
      %v364 = vunpack.c.h.b16 %v247
      %v365 = vunpack.c.l.b16 %v248
      %v366 = vunpack.c.h.b16 %v248
      %v367 = vunpack.c.l.b16 %v249
      %v368 = vunpack.c.h.b16 %v249
      %v369 = vunpack.c.l.b16 %v250
      %v370 = vunpack.c.h.b16 %v250
      %v371 = vunpack.c.l.b16 %v251
      %v372 = vunpack.c.h.b16 %v251
      %v373 = vunpack.c.l.b16 %v252
      %v374 = vunpack.c.h.b16 %v252
      %v375 = vunpack.c.l.b16 %v253
      %v376 = vunpack.c.h.b16 %v253
      %v377 = vunpack.c.l.b16 %v254
      %v378 = vunpack.c.h.b16 %v254
      %v379 = vunpack.c.l.b16 %v255
      %v380 = vunpack.c.h.b16 %v255
      %v381 = vunpack.c.l.b16 %v256
      %v382 = vunpack.c.h.b16 %v256
      %v383 = vunpack.c.l.b16 %v257
      %v384 = vunpack.c.h.b16 %v257
      %v385 = vunpack.c.l.b16 %v258
      %v386 = vunpack.c.h.b16 %v258
      %v387 = vunpack.c.l.b16 %v259
      %v388 = vunpack.c.h.b16 %v259
      %v389 = vunpack.c.l.b16 %v260
      %v390 = vunpack.c.h.b16 %v260
      %v391 = vunpack.c.l.b16 %v261
      %v392 = vunpack.c.h.b16 %v261
      %v393 = vunpack.c.l.b16 %v262
      %v394 = vunpack.c.h.b16 %v262
      %v395 = vunpack.c.l.b16 %v263
      %v396 = vunpack.c.h.b16 %v263
      %v397 = vunpack.c.l.b16 %v264
      %v398 = vunpack.c.h.b16 %v264
      %v399 = vunpack.c.l.b16 %v265
      %v400 = vunpack.c.h.b16 %v265
      %v401 = vpack.c.b16 %v339, %v337
      %v402 = vpack.c.b16 %v340, %v338
      %v403 = vpack.c.b16 %v343, %v341
      %v404 = vpack.c.b16 %v344, %v342
      %v405 = vpack.c.b16 %v347, %v345
      %v406 = vpack.c.b16 %v348, %v346
      %v407 = vpack.c.b16 %v351, %v349
      %v408 = vpack.c.b16 %v352, %v350
      %v409 = vpack.c.b16 %v355, %v353
      %v410 = vpack.c.b16 %v356, %v354
      %v411 = vpack.c.b16 %v359, %v357
      %v412 = vpack.c.b16 %v360, %v358
      %v413 = vpack.c.b16 %v363, %v361
      %v414 = vpack.c.b16 %v364, %v362
      %v415 = vpack.c.b16 %v367, %v365
      %v416 = vpack.c.b16 %v368, %v366
      %v417 = vpack.c.b16 %v371, %v369
      %v418 = vpack.c.b16 %v372, %v370
      %v419 = vpack.c.b16 %v375, %v373
      %v420 = vpack.c.b16 %v376, %v374
      %v421 = vpack.c.b16 %v379, %v377
      %v422 = vpack.c.b16 %v380, %v378
      %v423 = vpack.c.b16 %v383, %v381
      %v424 = vpack.c.b16 %v384, %v382
      %v425 = vpack.c.b16 %v387, %v385
      %v426 = vpack.c.b16 %v388, %v386
      %v427 = vpack.c.b16 %v391, %v389
      %v428 = vpack.c.b16 %v392, %v390
      %v429 = vpack.c.b16 %v395, %v393
      %v430 = vpack.c.b16 %v396, %v394
      %v431 = vpack.c.b16 %v399, %v397
      %v432 = vpack.c.b16 %v400, %v398
      %v497 = vunpack.c.l.b16 %v266
      %v498 = vunpack.c.l.b16 %v267
      %v499 = vunpack.c.l.b16 %v268
      %v500 = vunpack.c.l.b16 %v269
      %v501 = vunpack.c.l.b16 %v270
      %v502 = vunpack.c.l.b16 %v271
      %v503 = vunpack.c.l.b16 %v272
      %v504 = vunpack.c.l.b16 %v273
      %v505 = vunpack.c.l.b16 %v274
      %v506 = vunpack.c.l.b16 %v275
      %v507 = vunpack.c.l.b16 %v276
      %v508 = vunpack.c.l.b16 %v277
      %v509 = vunpack.c.l.b16 %v278
      %v510 = vunpack.c.l.b16 %v279
      %v511 = vunpack.c.l.b16 %v280
      %v512 = vunpack.c.l.b16 %v281
      %v513 = vunpack.c.l.b16 %v282
      %v514 = vunpack.c.l.b16 %v283
      %v515 = vunpack.c.l.b16 %v284
      %v516 = vunpack.c.l.b16 %v285
      %v517 = vunpack.c.l.b16 %v286
      %v518 = vunpack.c.l.b16 %v287
      %v519 = vunpack.c.l.b16 %v288
      %v520 = vunpack.c.l.b16 %v289
      %v521 = vunpack.c.l.b16 %v290
      %v522 = vunpack.c.l.b16 %v291
      %v523 = vunpack.c.l.b16 %v292
      %v524 = vunpack.c.l.b16 %v293
      %v525 = vunpack.c.l.b16 %v294
      %v526 = vunpack.c.l.b16 %v295
      %v527 = vunpack.c.l.b16 %v296
      %v528 = vunpack.c.l.b16 %v297
      %v529 = vpack.c.b16 %v498, %v497
      %v530 = vpack.c.b16 %v500, %v499
      %v531 = vpack.c.b16 %v502, %v501
      %v532 = vpack.c.b16 %v504, %v503
      %v533 = vpack.c.b16 %v506, %v505
      %v534 = vpack.c.b16 %v508, %v507
      %v535 = vpack.c.b16 %v510, %v509
      %v536 = vpack.c.b16 %v512, %v511
      %v537 = vpack.c.b16 %v514, %v513
      %v538 = vpack.c.b16 %v516, %v515
      %v539 = vpack.c.b16 %v518, %v517
      %v540 = vpack.c.b16 %v520, %v519
      %v541 = vpack.c.b16 %v522, %v521
      %v542 = vpack.c.b16 %v524, %v523
      %v543 = vpack.c.b16 %v526, %v525
      %v544 = vpack.c.b16 %v528, %v527
      %561 = vmatprep.subr.bf16.mxu0 0
      %562 = vmatpush1.bf16.msra.mxu0 %v529
      %563 = vmatprep.subr.bf16.mxu0 0
      %564 = vmatpush1.bf16.msra.mxu0 %v530
      %565 = vmatprep.subr.bf16.mxu0 0
      %566 = vmatpush1.bf16.msra.mxu0 %v531
      %567 = vmatprep.subr.bf16.mxu0 0
      %568 = vmatpush1.bf16.msra.mxu0 %v532
      %569 = vmatprep.subr.bf16.mxu0 0
      %570 = vmatpush1.bf16.msra.mxu0 %v533
      %571 = vmatprep.subr.bf16.mxu0 0
      %572 = vmatpush1.bf16.msra.mxu0 %v534
      %573 = vmatprep.subr.bf16.mxu0 0
      %574 = vmatpush1.bf16.msra.mxu0 %v535
      %575 = vmatprep.subr.bf16.mxu0 0
      %576 = vmatpush1.bf16.msra.mxu0 %v536
      %577 = vmatprep.subr.bf16.mxu0 0
      %578 = vmatpush1.bf16.msra.mxu0 %v537
      %579 = vmatprep.subr.bf16.mxu0 0
      %580 = vmatpush1.bf16.msra.mxu0 %v538
      %581 = vmatprep.subr.bf16.mxu0 0
      %582 = vmatpush1.bf16.msra.mxu0 %v539
      %583 = vmatprep.subr.bf16.mxu0 0
      %584 = vmatpush1.bf16.msra.mxu0 %v540
      %585 = vmatprep.subr.bf16.mxu0 0
      %586 = vmatpush1.bf16.msra.mxu0 %v541
      %587 = vmatprep.subr.bf16.mxu0 0
      %588 = vmatpush1.bf16.msra.mxu0 %v542
      %589 = vmatprep.subr.bf16.mxu0 0
      %590 = vmatpush1.bf16.msra.mxu0 %v543
      %591 = vmatprep.subr.bf16.mxu0 0
      %592 = vmatpush1.bf16.msra.mxu0 %v544
      %593 = vmatprep.mubr.bf16.mxu0 %v402
      %594 = vmatmul.mubr.bf16.gmra.mrb[0].mxu0 %v401
      %v595 = vpop.f32.mrb[0].mxu0
      %v596 = vadd.f32 %v303, %v595
      %v597 = vpop.f32.mrb[0].mxu0
      %v598 = vpop.f32.mrb[0].mxu0
      %v599 = vadd.f32 %v303, %v598
      %v600 = vpop.f32.mrb[0].mxu0
      %601 = vmatprep.mubr.bf16.mxu0 %v404
      %602 = vmatmul.mubr.bf16.gmra.mrb[0].mxu0 %v403
      %v603 = vpop.f32.mrb[0].mxu0
      %v604 = vadd.f32 %v303, %v603
      %v605 = vpop.f32.mrb[0].mxu0
      %v606 = vpop.f32.mrb[0].mxu0
      %v607 = vadd.f32 %v303, %v606
      %v608 = vpop.f32.mrb[0].mxu0
      %609 = vmatprep.mubr.bf16.mxu0 %v406
      %610 = vmatmul.mubr.bf16.gmra.mrb[0].mxu0 %v405
      %v611 = vpop.f32.mrb[0].mxu0
      %v612 = vadd.f32 %v303, %v611
      %v613 = vpop.f32.mrb[0].mxu0
      %v614 = vpop.f32.mrb[0].mxu0
      %v615 = vadd.f32 %v303, %v614
      %v616 = vpop.f32.mrb[0].mxu0
      %617 = vmatprep.mubr.bf16.mxu0 %v408
      %618 = vmatmul.mubr.bf16.gmra.mrb[0].mxu0 %v407
      %v619 = vpop.f32.mrb[0].mxu0
      %v620 = vadd.f32 %v303, %v619
      %v621 = vpop.f32.mrb[0].mxu0
      %v622 = vpop.f32.mrb[0].mxu0
      %v623 = vadd.f32 %v303, %v622
      %v624 = vpop.f32.mrb[0].mxu0
      %625 = vmatprep.mubr.bf16.mxu0 %v410
      %626 = vmatmul.mubr.bf16.gmra.mrb[0].mxu0 %v409
      %v627 = vpop.f32.mrb[0].mxu0
      %v628 = vadd.f32 %v303, %v627
      %v629 = vpop.f32.mrb[0].mxu0
      %v630 = vpop.f32.mrb[0].mxu0
      %v631 = vadd.f32 %v303, %v630
      %v632 = vpop.f32.mrb[0].mxu0
      %633 = vmatprep.mubr.bf16.mxu0 %v412
      %634 = vmatmul.mubr.bf16.gmra.mrb[0].mxu0 %v411
      %v635 = vpop.f32.mrb[0].mxu0
      %v636 = vadd.f32 %v303, %v635
      %v637 = vpop.f32.mrb[0].mxu0
      %v638 = vpop.f32.mrb[0].mxu0
      %v639 = vadd.f32 %v303, %v638
      %v640 = vpop.f32.mrb[0].mxu0
      %641 = vmatprep.mubr.bf16.mxu0 %v414
      %642 = vmatmul.mubr.bf16.gmra.mrb[0].mxu0 %v413
      %v643 = vpop.f32.mrb[0].mxu0
      %v644 = vadd.f32 %v303, %v643
      %v645 = vpop.f32.mrb[0].mxu0
      %v646 = vpop.f32.mrb[0].mxu0
      %v647 = vadd.f32 %v303, %v646
      %v648 = vpop.f32.mrb[0].mxu0
      %649 = vmatprep.mubr.bf16.mxu0 %v416
      %650 = vmatmul.mubr.bf16.gmra.mrb[0].mxu0 %v415
      %v651 = vpop.f32.mrb[0].mxu0
      %v652 = vadd.f32 %v303, %v651
      %v653 = vpop.f32.mrb[0].mxu0
      %v654 = vpop.f32.mrb[0].mxu0
      %v655 = vadd.f32 %v303, %v654
      %v656 = vpop.f32.mrb[0].mxu0
      %657 = vmatprep.mubr.bf16.mxu0 %v418
      %658 = vmatmul.mubr.bf16.gmra.mrb[0].mxu0 %v417
      %v659 = vpop.f32.mrb[0].mxu0
      %v660 = vadd.f32 %v303, %v659
      %v661 = vpop.f32.mrb[0].mxu0
      %v662 = vpop.f32.mrb[0].mxu0
      %v663 = vadd.f32 %v303, %v662
      %v664 = vpop.f32.mrb[0].mxu0
      %665 = vmatprep.mubr.bf16.mxu0 %v420
      %666 = vmatmul.mubr.bf16.gmra.mrb[0].mxu0 %v419
      %v667 = vpop.f32.mrb[0].mxu0
      %v668 = vadd.f32 %v303, %v667
      %v669 = vpop.f32.mrb[0].mxu0
      %v670 = vpop.f32.mrb[0].mxu0
      %v671 = vadd.f32 %v303, %v670
      %v672 = vpop.f32.mrb[0].mxu0
      %673 = vmatprep.mubr.bf16.mxu0 %v422
      %674 = vmatmul.mubr.bf16.gmra.mrb[0].mxu0 %v421
      %v675 = vpop.f32.mrb[0].mxu0
      %v676 = vadd.f32 %v303, %v675
      %v677 = vpop.f32.mrb[0].mxu0
      %v678 = vpop.f32.mrb[0].mxu0
      %v679 = vadd.f32 %v303, %v678
      %v680 = vpop.f32.mrb[0].mxu0
      %681 = vmatprep.mubr.bf16.mxu0 %v424
      %682 = vmatmul.mubr.bf16.gmra.mrb[0].mxu0 %v423
      %v683 = vpop.f32.mrb[0].mxu0
      %v684 = vadd.f32 %v303, %v683
      %v685 = vpop.f32.mrb[0].mxu0
      %v686 = vpop.f32.mrb[0].mxu0
      %v687 = vadd.f32 %v303, %v686
      %v688 = vpop.f32.mrb[0].mxu0
      %689 = vmatprep.mubr.bf16.mxu0 %v426
      %690 = vmatmul.mubr.bf16.gmra.mrb[0].mxu0 %v425
      %v691 = vpop.f32.mrb[0].mxu0
      %v692 = vadd.f32 %v303, %v691
      %v693 = vpop.f32.mrb[0].mxu0
      %v694 = vpop.f32.mrb[0].mxu0
      %v695 = vadd.f32 %v303, %v694
      %v696 = vpop.f32.mrb[0].mxu0
      %697 = vmatprep.mubr.bf16.mxu0 %v428
      %698 = vmatmul.mubr.bf16.gmra.mrb[0].mxu0 %v427
      %v699 = vpop.f32.mrb[0].mxu0
      %v700 = vadd.f32 %v303, %v699
      %v701 = vpop.f32.mrb[0].mxu0
      %v702 = vpop.f32.mrb[0].mxu0
      %v703 = vadd.f32 %v303, %v702
      %v704 = vpop.f32.mrb[0].mxu0
      %705 = vmatprep.mubr.bf16.mxu0 %v430
      %706 = vmatmul.mubr.bf16.gmra.mrb[0].mxu0 %v429
      %v707 = vpop.f32.mrb[0].mxu0
      %v708 = vadd.f32 %v303, %v707
      %v709 = vpop.f32.mrb[0].mxu0
      %v710 = vpop.f32.mrb[0].mxu0
      %v711 = vadd.f32 %v303, %v710
      %v712 = vpop.f32.mrb[0].mxu0
      %713 = vmatprep.mubr.bf16.mxu0 %v432
      %714 = vmatmul.mubr.bf16.gmra.mrb[0].mxu0 %v431
      %v715 = vpop.f32.mrb[0].mxu0
      %v716 = vadd.f32 %v303, %v715
      %v717 = vpop.f32.mrb[0].mxu0
      %v718 = vpop.f32.mrb[0].mxu0
      %v719 = vadd.f32 %v303, %v718
      %v720 = vpop.f32.mrb[0].mxu0
      %721 = vdwg.mxu0
      %v722 = vmax.f32 %v596, 0.0
      %v723 = vmax.f32 %v599, 0.0
      %v724 = vmax.f32 %v604, 0.0
      %v725 = vmax.f32 %v607, 0.0
      %v726 = vmax.f32 %v612, 0.0
      %v727 = vmax.f32 %v615, 0.0
      %v728 = vmax.f32 %v620, 0.0
      %v729 = vmax.f32 %v623, 0.0
      %v730 = vmax.f32 %v628, 0.0
      %v731 = vmax.f32 %v631, 0.0
      %v732 = vmax.f32 %v636, 0.0
      %v733 = vmax.f32 %v639, 0.0
      %v734 = vmax.f32 %v644, 0.0
      %v735 = vmax.f32 %v647, 0.0
      %v736 = vmax.f32 %v652, 0.0
      %v737 = vmax.f32 %v655, 0.0
      %v738 = vmax.f32 %v660, 0.0
      %v739 = vmax.f32 %v663, 0.0
      %v740 = vmax.f32 %v668, 0.0
      %v741 = vmax.f32 %v671, 0.0
      %v742 = vmax.f32 %v676, 0.0
      %v743 = vmax.f32 %v679, 0.0
      %v744 = vmax.f32 %v684, 0.0
      %v745 = vmax.f32 %v687, 0.0
      %v746 = vmax.f32 %v692, 0.0
      %v747 = vmax.f32 %v695, 0.0
      %v748 = vmax.f32 %v700, 0.0
      %v749 = vmax.f32 %v703, 0.0
      %v750 = vmax.f32 %v708, 0.0
      %v751 = vmax.f32 %v711, 0.0
      %v752 = vmax.f32 %v716, 0.0
      %v753 = vmax.f32 %v719, 0.0
      %v754 = vpack.c.bf16 %v723, %v722
      %v755 = vpack.c.bf16 %v725, %v724
      %v756 = vpack.c.bf16 %v727, %v726
      %v757 = vpack.c.bf16 %v729, %v728
      %v758 = vpack.c.bf16 %v731, %v730
      %v759 = vpack.c.bf16 %v733, %v732
      %v760 = vpack.c.bf16 %v735, %v734
      %v761 = vpack.c.bf16 %v737, %v736
      %v762 = vpack.c.bf16 %v739, %v738
      %v763 = vpack.c.bf16 %v741, %v740
      %v764 = vpack.c.bf16 %v743, %v742
      %v765 = vpack.c.bf16 %v745, %v744
      %v766 = vpack.c.bf16 %v747, %v746
      %v767 = vpack.c.bf16 %v749, %v748
      %v768 = vpack.c.bf16 %v751, %v750
      %v769 = vpack.c.bf16 %v753, %v752
      %v770 = vld [vmem:[%s3] sm:$0xff]
      %v771 = vld [vmem:[%s3 + $0x8] sm:$0xff]
      %v772 = vld [vmem:[%s3 + $0x10] sm:$0xff]
      %v773 = vld [vmem:[%s3 + $0x18] sm:$0xff]
      %v774 = vld [vmem:[%s3 + $0x20] sm:$0xff]
      %v775 = vld [vmem:[%s3 + $0x28] sm:$0xff]
      %v776 = vld [vmem:[%s3 + $0x30] sm:$0xff]
      %v777 = vld [vmem:[%s3 + $0x38] sm:$0xff]
      %v778 = vld [vmem:[%s3 + $0x40] sm:$0xff]
      %v779 = vld [vmem:[%s3 + $0x48] sm:$0xff]
      %v780 = vld [vmem:[%s3 + $0x50] sm:$0xff]
      %v781 = vld [vmem:[%s3 + $0x58] sm:$0xff]
      %v782 = vld [vmem:[%s3 + $0x60] sm:$0xff]
      %v783 = vld [vmem:[%s3 + $0x68] sm:$0xff]
      %v784 = vld [vmem:[%s3 + $0x70] sm:$0xff]
      %v785 = vld [vmem:[%s3 + $0x78] sm:$0xff]
      %v786 = vld [vmem:[%s4] sm:$0x3]
      %v788 = vlaneseq
      %v789 = vshrl.u32 %v788, 7
      %v790 = vsub.s32 0, %v789
      %v791 = vrot.slane %v786, %v790
      %v792 = vlaneseq
      %v793 = vshrl.u32 %v792, 7
      %v794 = vsub.s32 1, %v793
      %v795 = vrot.slane %v786, %v794
      %v814 = vunpack.c.l.b16 %v770
      %v815 = vunpack.c.h.b16 %v770
      %v816 = vunpack.c.l.b16 %v771
      %v817 = vunpack.c.h.b16 %v771
      %v818 = vunpack.c.l.b16 %v772
      %v819 = vunpack.c.h.b16 %v772
      %v820 = vunpack.c.l.b16 %v773
      %v821 = vunpack.c.h.b16 %v773
      %v822 = vunpack.c.l.b16 %v774
      %v823 = vunpack.c.h.b16 %v774
      %v824 = vunpack.c.l.b16 %v775
      %v825 = vunpack.c.h.b16 %v775
      %v826 = vunpack.c.l.b16 %v776
      %v827 = vunpack.c.h.b16 %v776
      %v828 = vunpack.c.l.b16 %v777
      %v829 = vunpack.c.h.b16 %v777
      %v830 = vunpack.c.l.b16 %v778
      %v831 = vunpack.c.h.b16 %v778
      %v832 = vunpack.c.l.b16 %v779
      %v833 = vunpack.c.h.b16 %v779
      %v834 = vunpack.c.l.b16 %v780
      %v835 = vunpack.c.h.b16 %v780
      %v836 = vunpack.c.l.b16 %v781
      %v837 = vunpack.c.h.b16 %v781
      %v838 = vunpack.c.l.b16 %v782
      %v839 = vunpack.c.h.b16 %v782
      %v840 = vunpack.c.l.b16 %v783
      %v841 = vunpack.c.h.b16 %v783
      %v842 = vunpack.c.l.b16 %v784
      %v843 = vunpack.c.h.b16 %v784
      %v844 = vunpack.c.l.b16 %v785
      %v845 = vunpack.c.h.b16 %v785
      %v846 = vpack.c.b16 %v816, %v814
      %v847 = vpack.c.b16 %v817, %v815
      %v848 = vpack.c.b16 %v820, %v818
      %v849 = vpack.c.b16 %v821, %v819
      %v850 = vpack.c.b16 %v824, %v822
      %v851 = vpack.c.b16 %v825, %v823
      %v852 = vpack.c.b16 %v828, %v826
      %v853 = vpack.c.b16 %v829, %v827
      %v854 = vpack.c.b16 %v832, %v830
      %v855 = vpack.c.b16 %v833, %v831
      %v856 = vpack.c.b16 %v836, %v834
      %v857 = vpack.c.b16 %v837, %v835
      %v858 = vpack.c.b16 %v840, %v838
      %v859 = vpack.c.b16 %v841, %v839
      %v860 = vpack.c.b16 %v844, %v842
      %v861 = vpack.c.b16 %v845, %v843
      %878 = vmatprep.subr.bf16.mxu0 %v847
      %879 = vmatpush1.bf16.msra.mxu0 %v846
      %880 = vmatprep.subr.bf16.mxu0 %v849
      %881 = vmatpush1.bf16.msra.mxu0 %v848
      %882 = vmatprep.subr.bf16.mxu0 %v851
      %883 = vmatpush1.bf16.msra.mxu0 %v850
      %884 = vmatprep.subr.bf16.mxu0 %v853
      %885 = vmatpush1.bf16.msra.mxu0 %v852
      %886 = vmatprep.subr.bf16.mxu0 %v855
      %887 = vmatpush1.bf16.msra.mxu0 %v854
      %888 = vmatprep.subr.bf16.mxu0 %v857
      %889 = vmatpush1.bf16.msra.mxu0 %v856
      %890 = vmatprep.subr.bf16.mxu0 %v859
      %891 = vmatpush1.bf16.msra.mxu0 %v858
      %892 = vmatprep.subr.bf16.mxu0 %v861
      %893 = vmatpush1.bf16.msra.mxu0 %v860
      %894 = vmatprep.subr.bf16.mxu0 0
      %895 = vmatpush1.bf16.msra.mxu0 0
      %896 = vmatprep.subr.bf16.mxu0 0
      %897 = vmatpush1.bf16.msra.mxu0 0
      %898 = vmatprep.subr.bf16.mxu0 0
      %899 = vmatpush1.bf16.msra.mxu0 0
      %900 = vmatprep.subr.bf16.mxu0 0
      %901 = vmatpush1.bf16.msra.mxu0 0
      %902 = vmatprep.subr.bf16.mxu0 0
      %903 = vmatpush1.bf16.msra.mxu0 0
      %904 = vmatprep.subr.bf16.mxu0 0
      %905 = vmatpush1.bf16.msra.mxu0 0
      %906 = vmatprep.subr.bf16.mxu0 0
      %907 = vmatpush1.bf16.msra.mxu0 0
      %908 = vmatprep.subr.bf16.mxu0 0
      %909 = vmatpush1.bf16.msra.mxu0 0
      %910 = vmatprep.mubr.bf16.mxu0 0
      %911 = vmatmul.mubr.bf16.gmra.mrb[0].mxu0 %v754
      %v912 = vpop.f32.mrb[0].mxu0
      %v913 = vadd.f32 %v791, %v912
      %v914 = vpop.f32.mrb[0].mxu0
      %v915 = vadd.f32 %v795, %v914
      %v916 = vpop.f32.mrb[0].mxu0
      %v917 = vadd.f32 %v791, %v916
      %v918 = vpop.f32.mrb[0].mxu0
      %v919 = vadd.f32 %v795, %v918
      %920 = vmatprep.mubr.bf16.mxu0 0
      %921 = vmatmul.mubr.bf16.gmra.mrb[0].mxu0 %v755
      %v922 = vpop.f32.mrb[0].mxu0
      %v923 = vadd.f32 %v791, %v922
      %v924 = vpop.f32.mrb[0].mxu0
      %v925 = vadd.f32 %v795, %v924
      %v926 = vpop.f32.mrb[0].mxu0
      %v927 = vadd.f32 %v791, %v926
      %v928 = vpop.f32.mrb[0].mxu0
      %v929 = vadd.f32 %v795, %v928
      %930 = vmatprep.mubr.bf16.mxu0 0
      %931 = vmatmul.mubr.bf16.gmra.mrb[0].mxu0 %v756
      %v932 = vpop.f32.mrb[0].mxu0
      %v933 = vadd.f32 %v791, %v932
      %v934 = vpop.f32.mrb[0].mxu0
      %v935 = vadd.f32 %v795, %v934
      %v936 = vpop.f32.mrb[0].mxu0
      %v937 = vadd.f32 %v791, %v936
      %v938 = vpop.f32.mrb[0].mxu0
      %v939 = vadd.f32 %v795, %v938
      %940 = vmatprep.mubr.bf16.mxu0 0
      %941 = vmatmul.mubr.bf16.gmra.mrb[0].mxu0 %v757
      %v942 = vpop.f32.mrb[0].mxu0
      %v943 = vadd.f32 %v791, %v942
      %v944 = vpop.f32.mrb[0].mxu0
      %v945 = vadd.f32 %v795, %v944
      %v946 = vpop.f32.mrb[0].mxu0
      %v947 = vadd.f32 %v791, %v946
      %v948 = vpop.f32.mrb[0].mxu0
      %v949 = vadd.f32 %v795, %v948
      %950 = vmatprep.mubr.bf16.mxu0 0
      %951 = vmatmul.mubr.bf16.gmra.mrb[0].mxu0 %v758
      %v952 = vpop.f32.mrb[0].mxu0
      %v953 = vadd.f32 %v791, %v952
      %v954 = vpop.f32.mrb[0].mxu0
      %v955 = vadd.f32 %v795, %v954
      %v956 = vpop.f32.mrb[0].mxu0
      %v957 = vadd.f32 %v791, %v956
      %v958 = vpop.f32.mrb[0].mxu0
      %v959 = vadd.f32 %v795, %v958
      %960 = vmatprep.mubr.bf16.mxu0 0
      %961 = vmatmul.mubr.bf16.gmra.mrb[0].mxu0 %v759
      %v962 = vpop.f32.mrb[0].mxu0
      %v963 = vadd.f32 %v791, %v962
      %v964 = vpop.f32.mrb[0].mxu0
      %v965 = vadd.f32 %v795, %v964
      %v966 = vpop.f32.mrb[0].mxu0
      %v967 = vadd.f32 %v791, %v966
      %v968 = vpop.f32.mrb[0].mxu0
      %v969 = vadd.f32 %v795, %v968
      %970 = vmatprep.mubr.bf16.mxu0 0
      %971 = vmatmul.mubr.bf16.gmra.mrb[0].mxu0 %v760
      %v972 = vpop.f32.mrb[0].mxu0
      %v973 = vadd.f32 %v791, %v972
      %v974 = vpop.f32.mrb[0].mxu0
      %v975 = vadd.f32 %v795, %v974
      %v976 = vpop.f32.mrb[0].mxu0
      %v977 = vadd.f32 %v791, %v976
      %v978 = vpop.f32.mrb[0].mxu0
      %v979 = vadd.f32 %v795, %v978
      %980 = vmatprep.mubr.bf16.mxu0 0
      %981 = vmatmul.mubr.bf16.gmra.mrb[0].mxu0 %v761
      %v982 = vpop.f32.mrb[0].mxu0
      %v983 = vadd.f32 %v791, %v982
      %v984 = vpop.f32.mrb[0].mxu0
      %v985 = vadd.f32 %v795, %v984
      %v986 = vpop.f32.mrb[0].mxu0
      %v987 = vadd.f32 %v791, %v986
      %v988 = vpop.f32.mrb[0].mxu0
      %v989 = vadd.f32 %v795, %v988
      %990 = vmatprep.mubr.bf16.mxu0 0
      %991 = vmatmul.mubr.bf16.gmra.mrb[0].mxu0 %v762
      %v992 = vpop.f32.mrb[0].mxu0
      %v993 = vadd.f32 %v791, %v992
      %v994 = vpop.f32.mrb[0].mxu0
      %v995 = vadd.f32 %v795, %v994
      %v996 = vpop.f32.mrb[0].mxu0
      %v997 = vadd.f32 %v791, %v996
      %v998 = vpop.f32.mrb[0].mxu0
      %v999 = vadd.f32 %v795, %v998
      %1000 = vmatprep.mubr.bf16.mxu0 0
      %1001 = vmatmul.mubr.bf16.gmra.mrb[0].mxu0 %v763
      %v1002 = vpop.f32.mrb[0].mxu0
      %v1003 = vadd.f32 %v791, %v1002
      %v1004 = vpop.f32.mrb[0].mxu0
      %v1005 = vadd.f32 %v795, %v1004
      %v1006 = vpop.f32.mrb[0].mxu0
      %v1007 = vadd.f32 %v791, %v1006
      %v1008 = vpop.f32.mrb[0].mxu0
      %v1009 = vadd.f32 %v795, %v1008
      %1010 = vmatprep.mubr.bf16.mxu0 0
      %1011 = vmatmul.mubr.bf16.gmra.mrb[0].mxu0 %v764
      %v1012 = vpop.f32.mrb[0].mxu0
      %v1013 = vadd.f32 %v791, %v1012
      %v1014 = vpop.f32.mrb[0].mxu0
      %v1015 = vadd.f32 %v795, %v1014
      %v1016 = vpop.f32.mrb[0].mxu0
      %v1017 = vadd.f32 %v791, %v1016
      %v1018 = vpop.f32.mrb[0].mxu0
      %v1019 = vadd.f32 %v795, %v1018
      %1020 = vmatprep.mubr.bf16.mxu0 0
      %1021 = vmatmul.mubr.bf16.gmra.mrb[0].mxu0 %v765
      %v1022 = vpop.f32.mrb[0].mxu0
      %v1023 = vadd.f32 %v791, %v1022
      %v1024 = vpop.f32.mrb[0].mxu0
      %v1025 = vadd.f32 %v795, %v1024
      %v1026 = vpop.f32.mrb[0].mxu0
      %v1027 = vadd.f32 %v791, %v1026
      %v1028 = vpop.f32.mrb[0].mxu0
      %v1029 = vadd.f32 %v795, %v1028
      %1030 = vmatprep.mubr.bf16.mxu0 0
      %1031 = vmatmul.mubr.bf16.gmra.mrb[0].mxu0 %v766
      %v1032 = vpop.f32.mrb[0].mxu0
      %v1033 = vadd.f32 %v791, %v1032
      %v1034 = vpop.f32.mrb[0].mxu0
      %v1035 = vadd.f32 %v795, %v1034
      %v1036 = vpop.f32.mrb[0].mxu0
      %v1037 = vadd.f32 %v791, %v1036
      %v1038 = vpop.f32.mrb[0].mxu0
      %v1039 = vadd.f32 %v795, %v1038
      %1040 = vmatprep.mubr.bf16.mxu0 0
      %1041 = vmatmul.mubr.bf16.gmra.mrb[0].mxu0 %v767
      %v1042 = vpop.f32.mrb[0].mxu0
      %v1043 = vadd.f32 %v791, %v1042
      %v1044 = vpop.f32.mrb[0].mxu0
      %v1045 = vadd.f32 %v795, %v1044
      %v1046 = vpop.f32.mrb[0].mxu0
      %v1047 = vadd.f32 %v791, %v1046
      %v1048 = vpop.f32.mrb[0].mxu0
      %v1049 = vadd.f32 %v795, %v1048
      %1050 = vmatprep.mubr.bf16.mxu0 0
      %1051 = vmatmul.mubr.bf16.gmra.mrb[0].mxu0 %v768
      %v1052 = vpop.f32.mrb[0].mxu0
      %v1053 = vadd.f32 %v791, %v1052
      %v1054 = vpop.f32.mrb[0].mxu0
      %v1055 = vadd.f32 %v795, %v1054
      %v1056 = vpop.f32.mrb[0].mxu0
      %v1057 = vadd.f32 %v791, %v1056
      %v1058 = vpop.f32.mrb[0].mxu0
      %v1059 = vadd.f32 %v795, %v1058
      %1060 = vmatprep.mubr.bf16.mxu0 0
      %1061 = vmatmul.mubr.bf16.gmra.mrb[0].mxu0 %v769
      %v1062 = vpop.f32.mrb[0].mxu0
      %v1063 = vadd.f32 %v791, %v1062
      %v1064 = vpop.f32.mrb[0].mxu0
      %v1065 = vadd.f32 %v795, %v1064
      %v1066 = vpop.f32.mrb[0].mxu0
      %v1067 = vadd.f32 %v791, %v1066
      %v1068 = vpop.f32.mrb[0].mxu0
      %v1069 = vadd.f32 %v795, %v1068
      %1070 = vdwg.mxu0
      %1071 = vst [vmem:[%s231] sm:$0xff] %v913
      %1072 = vst [vmem:[%s231 + $0x8] sm:$0xff] %v915
      %1073 = vst [vmem:[%s231 + $0x10] sm:$0xff] %v917
      %1074 = vst [vmem:[%s231 + $0x18] sm:$0xff] %v919
      %1075 = vst [vmem:[%s231 + $0x20] sm:$0xff] %v923
      %1076 = vst [vmem:[%s231 + $0x28] sm:$0xff] %v925
      %1077 = vst [vmem:[%s231 + $0x30] sm:$0xff] %v927
      %1078 = vst [vmem:[%s231 + $0x38] sm:$0xff] %v929
      %1079 = vst [vmem:[%s231 + $0x40] sm:$0xff] %v933
      %1080 = vst [vmem:[%s231 + $0x48] sm:$0xff] %v935
      %1081 = vst [vmem:[%s231 + $0x50] sm:$0xff] %v937
      %1082 = vst [vmem:[%s231 + $0x58] sm:$0xff] %v939
      %1083 = vst [vmem:[%s231 + $0x60] sm:$0xff] %v943
      %1084 = vst [vmem:[%s231 + $0x68] sm:$0xff] %v945
      %1085 = vst [vmem:[%s231 + $0x70] sm:$0xff] %v947
      %1086 = vst [vmem:[%s231 + $0x78] sm:$0xff] %v949
      %1087 = vst [vmem:[%s231 + $0x80] sm:$0xff] %v953
      %1088 = vst [vmem:[%s231 + $0x88] sm:$0xff] %v955
      %1089 = vst [vmem:[%s231 + $0x90] sm:$0xff] %v957
      %1090 = vst [vmem:[%s231 + $0x98] sm:$0xff] %v959
      %1091 = vst [vmem:[%s231 + $0xa0] sm:$0xff] %v963
      %1092 = vst [vmem:[%s231 + $0xa8] sm:$0xff] %v965
      %1093 = vst [vmem:[%s231 + $0xb0] sm:$0xff] %v967
      %1094 = vst [vmem:[%s231 + $0xb8] sm:$0xff] %v969
      %1095 = vst [vmem:[%s231 + $0xc0] sm:$0xff] %v973
      %1096 = vst [vmem:[%s231 + $0xc8] sm:$0xff] %v975
      %1097 = vst [vmem:[%s231 + $0xd0] sm:$0xff] %v977
      %1098 = vst [vmem:[%s231 + $0xd8] sm:$0xff] %v979
      %1099 = vst [vmem:[%s231 + $0xe0] sm:$0xff] %v983
      %1100 = vst [vmem:[%s231 + $0xe8] sm:$0xff] %v985
      %1101 = vst [vmem:[%s231 + $0xf0] sm:$0xff] %v987
      %1102 = vst [vmem:[%s231 + $0xf8] sm:$0xff] %v989
      %1103 = vst [vmem:[%s231 + $0x100] sm:$0xff] %v993
      %1104 = vst [vmem:[%s231 + $0x108] sm:$0xff] %v995
      %1105 = vst [vmem:[%s231 + $0x110] sm:$0xff] %v997
      %1106 = vst [vmem:[%s231 + $0x118] sm:$0xff] %v999
      %1107 = vst [vmem:[%s231 + $0x120] sm:$0xff] %v1003
      %1108 = vst [vmem:[%s231 + $0x128] sm:$0xff] %v1005
      %1109 = vst [vmem:[%s231 + $0x130] sm:$0xff] %v1007
      %1110 = vst [vmem:[%s231 + $0x138] sm:$0xff] %v1009
      %1111 = vst [vmem:[%s231 + $0x140] sm:$0xff] %v1013
      %1112 = vst [vmem:[%s231 + $0x148] sm:$0xff] %v1015
      %1113 = vst [vmem:[%s231 + $0x150] sm:$0xff] %v1017
      %1114 = vst [vmem:[%s231 + $0x158] sm:$0xff] %v1019
      %1115 = vst [vmem:[%s231 + $0x160] sm:$0xff] %v1023
      %1116 = vst [vmem:[%s231 + $0x168] sm:$0xff] %v1025
      %1117 = vst [vmem:[%s231 + $0x170] sm:$0xff] %v1027
      %1118 = vst [vmem:[%s231 + $0x178] sm:$0xff] %v1029
      %1119 = vst [vmem:[%s231 + $0x180] sm:$0xff] %v1033
      %1120 = vst [vmem:[%s231 + $0x188] sm:$0xff] %v1035
      %1121 = vst [vmem:[%s231 + $0x190] sm:$0xff] %v1037
      %1122 = vst [vmem:[%s231 + $0x198] sm:$0xff] %v1039
      %1123 = vst [vmem:[%s231 + $0x1a0] sm:$0xff] %v1043
      %1124 = vst [vmem:[%s231 + $0x1a8] sm:$0xff] %v1045
      %1125 = vst [vmem:[%s231 + $0x1b0] sm:$0xff] %v1047
      %1126 = vst [vmem:[%s231 + $0x1b8] sm:$0xff] %v1049
      %1127 = vst [vmem:[%s231 + $0x1c0] sm:$0xff] %v1053
      %1128 = vst [vmem:[%s231 + $0x1c8] sm:$0xff] %v1055
      %1129 = vst [vmem:[%s231 + $0x1d0] sm:$0xff] %v1057
      %1130 = vst [vmem:[%s231 + $0x1d8] sm:$0xff] %v1059
      %1131 = vst [vmem:[%s231 + $0x1e0] sm:$0xff] %v1063
      %1132 = vst [vmem:[%s231 + $0x1e8] sm:$0xff] %v1065
      %1133 = vst [vmem:[%s231 + $0x1f0] sm:$0xff] %v1067
      %1134 = vst [vmem:[%s231 + $0x1f8] sm:$0xff] %v1069
      %s1135 = smul.u32 32, %s16
      %p1136 = scmp.lt.s32.totalorder %s1135, 63
      %s1137 = scalar_select %p1136, %s1135, 63
      %s1138 = smul.addr %s1137, 2
      %s1139 = smul.addr %s1138, 8
      %s1140 = scalar_lea.vmem %s5, %s1139
      // Predicated region
      $region41: #{mlp_encoder.1} parent=39 // pred_check
        %p1141 = pneg %p144
      $region42: #{mlp_encoder.1} parent=39 // pred_check_branch
        %1143 = sbr.rel (%p1141) target = $region44
      $region43: #{mlp_encoder.1} parent=39 // pred_region
        %s1144 = smul.u32 32, %s16
      $region44: #{mlp_encoder.1} parent=39 // pred_fallthru
        _
    $region40: #{mlp_encoder.1} parent=5 // pred_fallthru
      _
    %p1145 = scmp.le.s32.totalorder 2, %s11
    // Predicated region
    $region45: #{mlp_encoder.1} parent=5 // pred_check
      %p1146 = pneg %p1145
    $region46: #{mlp_encoder.1} parent=5 // pred_check_branch
      %1148 = sbr.rel (%p1146) target = $region48
    $region47: #{mlp_encoder.1} parent=5 // pred_region
      %s1149 = ssub.s32 %s11, 2
      // Predicated region
      $region49: #{mlp_encoder.1} parent=47 // pred_check
        %p1150 = pneg %p150
      $region50: #{mlp_encoder.1} parent=47 // pred_check_branch
        %1152 = sbr.rel (%p1150) target = $region52
      $region51: #{mlp_encoder.1} parent=47 // pred_region
        %s1153 = smul.u32 32, %s17
        %p1154 = scmp.lt.s32.totalorder %s1153, 63
        %s1155 = scalar_select %p1154, %s1153, 63
        %s1156 = smul.addr %s1155, 2
        %s1157 = smul.addr %s1156, 8
        %s1158 = scalar_lea.vmem %s5, %s1157
      $region52: #{mlp_encoder.1} parent=47 // pred_fallthru
        _
    $region48: #{mlp_encoder.1} parent=5 // pred_fallthru
      _
  $region6: #{mlp_encoder.1} parent=0 // loop_footer
    %s15 = sadd.s32 1, %s11
  $region7: #{mlp_encoder.1} parent=0 // loop_footer_branch
    %10 = sbr.rel target = $region3
  $region8: #{mlp_encoder.1} parent=0 // loop_exit
    _

</llo_original>
